<compile_context>
chip_gen: v6e
topology: v6e:2x2x1
jax: 0.10.0
libtpu: 0.0.40
codegen_flags: <defaults>
</compile_context>

<pallas_src>
import functools

import jax
import jax.numpy as jnp
from jax.experimental import pallas as pl
from jax.experimental.pallas import tpu as pltpu


def _patch_ce_kernel(label_ref, logit_ref, out_ref, *, spatial):
    """One grid step: sum of per-pixel CE over a (1, C, TL) logit block."""
    n = pl.program_id(0)          # image index
    l = pl.program_id(1)          # spatial tile index

    x = logit_ref[0].astype(jnp.float32)            # (C, TL), f32 math in vregs
    c_dim, tl = x.shape

    # Per-lane (spatial position) validity: handles the ragged tail tile
    # without any wrapper-side padding.
    lane = jax.lax.broadcasted_iota(jnp.int32, (1, tl), 1) + l * tl
    valid = lane < spatial                          # (1, TL)
    x = jnp.where(valid, x, 0.0)                    # neutralize OOB garbage

    # Numerically stable logsumexp over the class (sublane) axis.
    m = jnp.max(x, axis=0, keepdims=True)                               # (1, TL)
    lse = m + jnp.log(jnp.sum(jnp.exp(x - m), axis=0, keepdims=True))   # (1, TL)

    # Pick the target-class logit with an iota mask (no dense one-hot stream).
    target = label_ref[n]                                               # SMEM scalar
    cls = jax.lax.broadcasted_iota(jnp.int32, (c_dim, tl), 0)
    picked = jnp.sum(jnp.where(cls == target, x, 0.0), axis=0, keepdims=True)

    partial = jnp.sum(jnp.where(valid, lse - picked, 0.0))              # scalar

    # Lane-dense (1, 128) partial block; lane 0 carries the value, rest are 0.
    lane128 = jax.lax.broadcasted_iota(jnp.int32, (1, 128), 1)
    out_ref[...] = jnp.where(lane128 == 0, partial, 0.0)


@functools.partial(jax.jit, static_argnames=("tile_lanes",))
def patch_ce(logit, label, *, tile_lanes=2048):
    """Pallas implementation of PatchCE.forward(logit, label)."""
    N, C, H, W = logit.shape
    L = H * W

    x = logit.reshape(N, C, L)                 # free reshape, native dtype kept
    label = label.astype(jnp.int32)

    # Choose the spatial tile width: multiple of 128 (or the full spatial dim),
    # capped so a double-buffered logit block stays under ~8 MiB.
    assert tile_lanes % 128 == 0
    itemsize = jnp.dtype(logit.dtype).itemsize
    budget = 8 * 1024 * 1024
    max_tl = max(128, (budget // (2 * C * itemsize)) // 128 * 128)
    tl_cap = min(tile_lanes, max_tl)
    TL = L if L <= tl_cap else tl_cap
    grid_l = pl.cdiv(L, TL)

    partials = pl.pallas_call(
        functools.partial(_patch_ce_kernel, spatial=L),
        out_shape=jax.ShapeDtypeStruct((1, N * grid_l * 128), jnp.float32),
        grid_spec=pltpu.PrefetchScalarGridSpec(
            num_scalar_prefetch=1,                 # label -> SMEM
            grid=(N, grid_l),
            in_specs=[
                pl.BlockSpec((1, C, TL), lambda n, l, lab: (n, 0, l)),
            ],
            out_specs=pl.BlockSpec(
                (1, 128), lambda n, l, lab: (0, n * grid_l + l)),
        ),
        compiler_params=pltpu.CompilerParams(
            dimension_semantics=("parallel", "parallel")),
    )(label, x)

    return jnp.sum(partials) / jnp.float32(N * L)


def _reference_patch_ce(logit, label):
    """Pure-JAX reference mirroring torch.nn.CrossEntropyLoss semantics."""
    N, C, H, W = logit.shape
    logp = jax.nn.log_softmax(logit.astype(jnp.float32), axis=1)    # (N, C, H, W)
    tgt = jnp.broadcast_to(label[:, None, None], (N, H, W))         # (N, H, W)
    picked = jnp.take_along_axis(logp, tgt[:, None, :, :], axis=1)[:, 0]
    return -jnp.mean(picked)


if __name__ == "__main__":
    key = jax.random.PRNGKey(0)
    k1, k2 = jax.random.split(key)

    N, C, H, W = 2, 4, 16, 16
    logit = jax.random.normal(k1, (N, C, H, W), dtype=jnp.float32)
    label = jax.random.randint(k2, (N,), 0, C, dtype=jnp.int32)

    loss = patch_ce(logit, label)
    loss = jax.block_until_ready(loss)

    ref = _reference_patch_ce(logit, label)
    assert jnp.allclose(loss, ref, rtol=1e-5, atol=1e-5), (loss, ref)

    print("KERNEL_OK")
</pallas_src>

<mosaic_0001>
module attributes {stable_mosaic.version = 11 : i64} {
  func.func @_patch_ce_kernel(%arg0: i32, %arg1: i32, %arg2: memref<2xi32, #tpu.memory_space<smem>>, %arg3: memref<1x4x256xf32, #tpu.memory_space<vmem>>, %arg4: memref<1x128xf32, #tpu.memory_space<vmem>>) attributes {dimension_semantics = [#tpu.dimension_semantics<parallel>, #tpu.dimension_semantics<parallel>], iteration_bounds = array<i64: 2, 1>, scalar_prefetch = 1 : i64, scratch_operands = 0 : i64, tpu.core_type = #tpu.core_type<tc>, window_params = [{transform_indices = @transform_0, window_bounds = array<i64: 1, 4, 256>}, {transform_indices = @transform_1, window_bounds = array<i64: 1, 128>}]} {
    %c0 = arith.constant 0 : index
    %c0_0 = arith.constant 0 : index
    %c0_1 = arith.constant 0 : index
    %0 = vector.load %arg3[%c0, %c0_0, %c0_1] : memref<1x4x256xf32, #tpu.memory_space<vmem>>, vector<1x4x256xf32>
    %1 = vector.shape_cast %0 : vector<1x4x256xf32> to vector<4x256xf32>
    %2 = tpu.iota {dimensions = array<i32: 1>} : vector<1x256xi32>
    %c256_i32 = arith.constant 256 : i32
    %3 = arith.muli %arg1, %c256_i32 : i32
    %4 = vector.broadcast %3 : i32 to vector<1x256xi32>
    %5 = arith.addi %2, %4 : vector<1x256xi32>
    %c256_i32_2 = arith.constant 256 : i32
    %6 = vector.broadcast %c256_i32_2 : i32 to vector<1x256xi32>
    %7 = arith.cmpi slt, %5, %6 : vector<1x256xi32>
    %cst = arith.constant 0.000000e+00 : f32
    %8 = vector.shape_cast %7 : vector<1x256xi1> to vector<1x256xi1>
    %9 = vector.broadcast %8 : vector<1x256xi1> to vector<4x256xi1>
    %10 = vector.broadcast %cst : f32 to vector<4x256xf32>
    %11 = arith.select %9, %1, %10 : vector<4x256xi1>, vector<4x256xf32>
    %cst_3 = arith.constant dense<0xFF800000> : vector<256xf32>
    %12 = vector.multi_reduction <maximumf>, %11, %cst_3 [0] : vector<4x256xf32> to vector<256xf32>
    %13 = vector.shape_cast %12 : vector<256xf32> to vector<1x256xf32>
    %14 = vector.broadcast %13 : vector<1x256xf32> to vector<4x256xf32>
    %15 = arith.subf %11, %14 : vector<4x256xf32>
    %16 = math.exp %15 : vector<4x256xf32>
    %cst_4 = arith.constant dense<0.000000e+00> : vector<256xf32>
    %17 = vector.multi_reduction <add>, %16, %cst_4 [0] : vector<4x256xf32> to vector<256xf32>
    %18 = vector.shape_cast %17 : vector<256xf32> to vector<1x256xf32>
    %19 = math.log %18 : vector<1x256xf32>
    %20 = arith.addf %13, %19 : vector<1x256xf32>
    %21 = arith.index_cast %arg0 : i32 to index
    %22 = memref.load %arg2[%21] : memref<2xi32, #tpu.memory_space<smem>>
    %23 = tpu.iota {dimensions = array<i32: 0>} : vector<4x256xi32>
    %24 = vector.broadcast %22 : i32 to vector<4x256xi32>
    %25 = arith.cmpi eq, %23, %24 : vector<4x256xi32>
    %cst_5 = arith.constant 0.000000e+00 : f32
    %26 = vector.broadcast %cst_5 : f32 to vector<4x256xf32>
    %27 = arith.select %25, %11, %26 : vector<4x256xi1>, vector<4x256xf32>
    %cst_6 = arith.constant dense<0.000000e+00> : vector<256xf32>
    %28 = vector.multi_reduction <add>, %27, %cst_6 [0] : vector<4x256xf32> to vector<256xf32>
    %29 = vector.shape_cast %28 : vector<256xf32> to vector<1x256xf32>
    %30 = arith.subf %20, %29 : vector<1x256xf32>
    %cst_7 = arith.constant 0.000000e+00 : f32
    %31 = vector.broadcast %cst_7 : f32 to vector<1x256xf32>
    %32 = arith.select %7, %30, %31 : vector<1x256xi1>, vector<1x256xf32>
    %33 = vector.shape_cast %32 : vector<1x256xf32> to vector<1x1x256xf32>
    %cst_8 = arith.constant dense<0.000000e+00> : vector<1xf32>
    %34 = vector.multi_reduction <add>, %33, %cst_8 [1, 2] : vector<1x1x256xf32> to vector<1xf32>
    %35 = vector.shape_cast %34 : vector<1xf32> to vector<1x1x1xf32>
    %36 = vector.extract %35[0, 0, 0] : f32 from vector<1x1x1xf32>
    %37 = tpu.iota {dimensions = array<i32: 1>} : vector<1x128xi32>
    %c0_i32 = arith.constant 0 : i32
    %38 = vector.broadcast %c0_i32 : i32 to vector<1x128xi32>
    %39 = arith.cmpi eq, %37, %38 : vector<1x128xi32>
    %cst_9 = arith.constant 0.000000e+00 : f32
    %40 = vector.broadcast %36 : f32 to vector<1x128xf32>
    %41 = vector.broadcast %cst_9 : f32 to vector<1x128xf32>
    %42 = arith.select %39, %40, %41 : vector<1x128xi1>, vector<1x128xf32>
    %c0_10 = arith.constant 0 : index
    %c0_11 = arith.constant 0 : index
    %43 = vector.load %arg4[%c0_10, %c0_11] : memref<1x128xf32, #tpu.memory_space<vmem>>, vector<1x128xf32>
    tpu.vector_store %arg4[%c0_10, %c0_11], %42 {strides = array<i32>} : memref<1x128xf32, #tpu.memory_space<vmem>>, vector<1x128xf32>,
    return
  }
  func.func @transform_0(%arg0: i32, %arg1: i32, %arg2: memref<2xi32, #tpu.memory_space<smem>>) -> (i32, i32, i32) {
    %c0_i32 = arith.constant 0 : i32
    %c0_i32_0 = arith.constant 0 : i32
    return %arg0, %c0_i32, %arg1 : i32, i32, i32
  }
  func.func @transform_1(%arg0: i32, %arg1: i32, %arg2: memref<2xi32, #tpu.memory_space<smem>>) -> (i32, i32) {
    %c1_i32 = arith.constant 1 : i32
    %0 = arith.muli %arg0, %c1_i32 : i32
    %1 = arith.addi %0, %arg1 : i32
    %c0_i32 = arith.constant 0 : i32
    %c0_i32_0 = arith.constant 0 : i32
    return %c0_i32, %1 : i32, i32
  }
}

</mosaic_0001>

<llo_original>
// kernel: patch_ce.1
$region0: #{patch_ce.1}
  #allocation0 [shape = 'u32[]', space=smem, size = 0x4, offset = 0x4, fixed_abs, tag = 'smem constant byte address 0x4 - core index']
  #allocation1 [shape = 'u32[144,128]{1,0:T(1,128)}', space=vmem, size = 0x12000, scoped, tag = 'internal scratch']
  #allocation2 [shape = 's32[1]{0}', space=sflag, size = 0x4, scoped, tag = 'scoped memory for patch_ce.1']
  #allocation3 [shape = 'u8[512]{0}', space=smem, size = 0x200, scoped, tag = 'prefetched SMEM operand 0']
  %s0 = inlined_call_operand.vmem [shape: s32[2], index: 0, kind: input, shape index: {}]
  %s1 = inlined_call_operand.vmem [shape: f32[2,4,256], index: 1, kind: input, shape index: {}]
  %s2 = inlined_call_operand.vmem [shape: f32[1,256], index: 2, kind: output, shape index: {}]
  %s3 = sld [smem:[#allocation0]]
  $region37: #{patch_ce.1} parent=0
    _
  %s5 = ssub.s32 1, %s3
  %s6 = scalar_select 0, %s5, %s3
  %s7 = sshll.u32 %s0, 4
  %s8 = int_to_ptr.vmem [resolvable:$true] %s7
  %10 = dma.vmem_to_smem %s8, 16, [#allocation3], [#allocation2]
  %11 = dma.done [#allocation2], 16
  %12 = sfence
  loop: start=0, step=1, limit=4
  $region2: #{patch_ce.1} parent=0 // loop_pre_header
    _
  $region3: #{patch_ce.1} parent=0 // loop_header
    %s14 = sphi 0, %s18
    %p15 = scmp.ge.s32.totalorder %s14, 4
    %s21 = sphi 0, %s33
    %s22 = sphi 0, %s29
    %s23 = sphi 0, %s21
    %s24 = sphi 0, %s22
    %s25 = sphi 0, %s23
    %s26 = sphi 0, %s24
    %s38 = sphi 0, %s40
    %s41 = sphi 0, %s38
    %s42 = sphi 0, %s41
    %s58 = sphi 0, %s42
    %s66 = sphi 0, %s68
    %s69 = sphi 0, %s66
    %s70 = sphi 0, %s69
    %s86 = sphi 0, %s70
  $region4: #{patch_ce.1} parent=0 // loop_header_branch
    %17 = sbr.rel (%p15) target = $region8
  $region5: #{patch_ce.1} parent=0 // loop_body
    %s19 = ssub.s32 %s14, 1
    %s20 = ssub.s32 %s14, 2
    %s27 = sadd.s32 1, %s22
    %p28 = scmp.ge.s32.totalorder %s27, 1
    %s29 = scalar_select %p28, 0, %s27
    %s30 = sadd.s32 1, %s21
    %s31 = scalar_select %p28, %s30, %s21
    %p32 = scmp.ge.s32.totalorder %s31, 2
    %s33 = scalar_select %p32, 0, %s31
    %s34 = ssub.s32 %s21, %s33
    %s35 = ssub.s32 %s22, %s29
    %s36 = sor.u32 %s34, %s35
    %p37 = scmp.eq.s32.totalorder %s36, 0
    %s39 = sadd.s32 %s38, 1
    %s40 = scalar_select %p37, %s38, %s39
    %p43 = pneg %p37
    %p44 = scmp.eq.s32.totalorder %s14, 1
    %p45 = por %p43, %p44
    %p46 = scmp.ne.s32.totalorder %s38, %s41
    %p47 = scmp.eq.s32.totalorder %s14, 0
    %p48 = por %p46, %p47
    %p49 = scmp.ne.s32.totalorder %s38, %s41
    %p50 = scmp.eq.s32.totalorder %s19, 1
    %p51 = por %p49, %p50
    %p52 = scmp.ne.s32.totalorder %s41, %s42
    %p53 = scmp.eq.s32.totalorder %s19, 0
    %p54 = por %p52, %p53
    %p55 = scmp.ne.s32.totalorder %s41, %s42
    %p56 = scmp.eq.s32.totalorder %s20, 1
    %p57 = por %p55, %p56
    %p59 = scmp.ne.s32.totalorder %s42, %s58
    %p60 = scmp.eq.s32.totalorder %s20, 0
    %p61 = por %p59, %p60
    %s62 = sadd.s32 %s21, %s22
    %s63 = sadd.s32 %s33, %s29
    %s64 = ssub.s32 %s62, %s63
    %p65 = scmp.eq.s32.totalorder %s64, 0
    %s67 = sadd.s32 %s66, 1
    %s68 = scalar_select %p65, %s66, %s67
    %p71 = pneg %p65
    %p72 = scmp.eq.s32.totalorder %s14, 1
    %p73 = por %p71, %p72
    %p74 = scmp.ne.s32.totalorder %s66, %s69
    %p75 = scmp.eq.s32.totalorder %s14, 0
    %p76 = por %p74, %p75
    %p77 = scmp.ne.s32.totalorder %s66, %s69
    %p78 = scmp.eq.s32.totalorder %s19, 1
    %p79 = por %p77, %p78
    %p80 = scmp.ne.s32.totalorder %s69, %s70
    %p81 = scmp.eq.s32.totalorder %s19, 0
    %p82 = por %p80, %p81
    %p83 = scmp.ne.s32.totalorder %s69, %s70
    %p84 = scmp.eq.s32.totalorder %s20, 1
    %p85 = por %p83, %p84
    %p87 = scmp.ne.s32.totalorder %s70, %s86
    %p88 = scmp.eq.s32.totalorder %s20, 0
    %p89 = por %p87, %p88
    %p90 = scmp.le.s32.totalorder 1, %s14
    %p91 = scmp.lt.s32.totalorder %s14, 3
    %p92 = pnand %p90, %p91
    %p93 = pneg %p92
    // Predicated region
    $region9: #{patch_ce.1} parent=5 // pred_check
      _
    $region10: #{patch_ce.1} parent=5 // pred_check_branch
      %95 = sbr.rel (%p92) target = $region12
    $region11: #{patch_ce.1} parent=5 // pred_region
      %s96 = ssub.s32 %s14, 1
    $region12: #{patch_ce.1} parent=5 // pred_fallthru
      _
    %p97 = scmp.lt.s32.totalorder %s14, 2
    // Predicated region
    $region13: #{patch_ce.1} parent=5 // pred_check
      %p98 = pneg %p97
    $region14: #{patch_ce.1} parent=5 // pred_check_branch
      %100 = sbr.rel (%p98) target = $region16
    $region15: #{patch_ce.1} parent=5 // pred_region
      // Predicated region
      $region17: #{patch_ce.1} parent=15 // pred_check
        %p101 = pneg %p48
      $region18: #{patch_ce.1} parent=15 // pred_check_branch
        %103 = sbr.rel (%p101) target = $region20
      $region19: #{patch_ce.1} parent=15 // pred_region
        %s104 = smul.u32 2, %s22
        %p105 = scmp.lt.s32.totalorder %s21, 1
        %s106 = scalar_select %p105, %s21, 1
        %p107 = scmp.lt.s32.totalorder %s104, 1
        %s108 = scalar_select %p107, %s104, 1
        %s109 = smul.addr %s106, 2
        %s110 = sadd.s32 %s108, %s109
        %s111 = smul.addr %s110, 4
        %s112 = scalar_lea.vmem %s1, %s111
        %s113 = smul.u32 2, %s22
      $region20: #{patch_ce.1} parent=15 // pred_fallthru
        _
    $region16: #{patch_ce.1} parent=5 // pred_fallthru
      _
    %p114 = scmp.le.s32.totalorder 1, %s14
    %p115 = scmp.lt.s32.totalorder %s14, 3
    %p116 = pnand %p114, %p115
    %p117 = pneg %p116
    // Predicated region
    $region21: #{patch_ce.1} parent=5 // pred_check
      _
    $region22: #{patch_ce.1} parent=5 // pred_check_branch
      %119 = sbr.rel (%p116) target = $region24
    $region23: #{patch_ce.1} parent=5 // pred_region
      %s120 = ssub.s32 %s14, 1
      %s121 = smul.u32 2, %s24
      %p122 = scmp.lt.s32.totalorder %s23, 1
      %s123 = scalar_select %p122, %s23, 1
      %p124 = scmp.lt.s32.totalorder %s121, 1
      %s125 = scalar_select %p124, %s121, 1
      %s126 = smul.addr %s123, 2
      %s127 = sadd.s32 %s125, %s126
      %s128 = smul.addr %s127, 4
      %s129 = scalar_lea.vmem %s1, %s128
      %p130 = pneg %p54
      %p131 = pneg %p51
      %p132 = pneg %p82
      %p133 = pneg %p79
      %s134 = sadd.s32 %s23, %s24
      %p135 = scmp.lt.s32.totalorder %s134, 1
      %s136 = scalar_select %p135, %s134, 1
      %s137 = scalar_lea.vmem %s2, %s136
      %s138 = smul.u32 2, %s24
      %p139 = scmp.lt.s32.totalorder %s23, 1
      %s140 = scalar_select %p139, %s23, 1
      %p141 = scmp.lt.s32.totalorder %s138, 1
      %s142 = scalar_select %p141, %s138, 1
      %s143 = smul.addr %s140, 2
      %s144 = sadd.s32 %s142, %s143
      %s145 = smul.addr %s144, 4
      %s146 = scalar_lea.vmem %s1, %s145
      %s147 = smul.u32 2, %s24
      %s148 = sadd.s32 %s23, %s24
      %p149 = scmp.lt.s32.totalorder %s148, 1
      %s150 = scalar_select %p149, %s148, 1
      %s151 = scalar_lea.vmem %s2, %s150
      %s152 = sadd.s32 %s23, %s24
      %v153 = vld [vmem:[%s146] sm:$0xff]
      %v154 = vlaneseq
      %v155 = vand.u32 %v154, 127
      %v156 = vadd.s32 %v155, 128
      %s157 = smul.u32 %s24, 256
      %v158 = vstv %s157
      %v159 = vadd.s32 %v155, %v158
      %v160 = vadd.s32 %v156, %v158
      %vm161 = vcmp.lt.s32.totalorder %v159, 256
      %vm162 = vcmp.lt.s32.totalorder %v160, 256
      %v163 = vsel %vm161, 1, 0
      %v164 = vsel %vm162, 1, 0
      %vm165 = vcmp.eq.s32.totalorder %v163, 1
      %vm166 = vcmp.eq.s32.totalorder %v164, 1
      %v168 = vcombine.high %v153, %v153
      %v170 = vsel %vm165, %v153, 0.0
      %v171 = vsel %vm166, %v168, 0.0
      %vm172 = vcmask 1043456
      %v173 = vsel %vm172, %v170, -inf
      %v174 = vrot.slane %v173, 4
      %v175 = vmax.f32 %v173, %v174
      %v176 = vrot.slane %v175, 2
      %v177 = vmax.f32 %v175, %v176
      %v178 = vrot.slane %v177, 1
      %v179 = vmax.f32 %v177, %v178
      %v180 = vsel %vm172, %v171, -inf
      %v181 = vrot.slane %v180, 4
      %v182 = vmax.f32 %v180, %v181
      %v183 = vrot.slane %v182, 2
      %v184 = vmax.f32 %v182, %v183
      %v185 = vrot.slane %v184, 1
      %v186 = vmax.f32 %v184, %v185
      %v187 = vsub.f32 %v170, %v179
      %v188 = vsub.f32 %v171, %v186
      %v189 = vmul.f32 %v187, 1.442695
      %v190 = vpow.pop %v189
      %v191 = vmul.f32 %v188, 1.442695
      %v192 = vpow.pop %v191
      %v193 = vsel %vm172, %v190, 0.0
      %v194 = vrot.slane %v193, 4
      %v195 = vadd.f32 %v193, %v194
      %v196 = vrot.slane %v195, 2
      %v197 = vadd.f32 %v195, %v196
      %v198 = vrot.slane %v197, 1
      %v199 = vadd.f32 %v197, %v198
      %v200 = vsel %vm172, %v192, 0.0
      %v201 = vrot.slane %v200, 4
      %v202 = vadd.f32 %v200, %v201
      %v203 = vrot.slane %v202, 2
      %v204 = vadd.f32 %v202, %v203
      %v205 = vrot.slane %v204, 1
      %v206 = vadd.f32 %v204, %v205
      %v207 = vlog2.pop %v199
      %v208 = vmul.f32 %v207, 0.6931472
      %v209 = vlog2.pop %v206
      %v210 = vmul.f32 %v209, 0.6931472
      %v211 = vadd.f32 %v179, %v208
      %v212 = vadd.f32 %v186, %v210
      %s213 = sld [smem:[#allocation3 + %s23]]
      %v214 = vlaneseq
      %v215 = vshrl.u32 %v214, 7
      %v216 = vstv %s213
      %vm217 = vcmp.eq.s32.totalorder %v215, %v216
      %v218 = vsel %vm217, %v170, 0.0
      %v219 = vsel %vm217, %v171, 0.0
      %v220 = vsel %vm172, %v218, 0.0
      %v221 = vrot.slane %v220, 4
      %v222 = vadd.f32 %v220, %v221
      %v223 = vrot.slane %v222, 2
      %v224 = vadd.f32 %v222, %v223
      %v225 = vrot.slane %v224, 1
      %v226 = vadd.f32 %v224, %v225
      %v227 = vsel %vm172, %v219, 0.0
      %v228 = vrot.slane %v227, 4
      %v229 = vadd.f32 %v227, %v228
      %v230 = vrot.slane %v229, 2
      %v231 = vadd.f32 %v229, %v230
      %v232 = vrot.slane %v231, 1
      %v233 = vadd.f32 %v231, %v232
      %v234 = vsub.f32 %v211, %v226
      %v235 = vsub.f32 %v212, %v233
      %v236 = vsel %vm161, %v234, 0.0
      %v237 = vsel %vm162, %v235, 0.0
      %vm238 = vcmask 1040384
      %v239 = vsel %vm238, %v236, 0.0
      %v240 = vsel %vm238, %v237, 0.0
      %v241 = vadd.f32 %v239, %v240
      %242 = vadd.xlane.f32.xlu0 %v241
      %v243 = vpop.xlane.xlu0 %242
      %v244 = vrot.slane %v243, 4
      %v245 = vadd.f32 %v243, %v244
      %v246 = vrot.slane %v245, 2
      %v247 = vadd.f32 %v245, %v246
      %v248 = vrot.slane %v247, 1
      %v249 = vadd.f32 %v247, %v248
      %s250 = vtos %v249
      %vm251 = vcmp.eq.s32.totalorder %v155, 0
      %v252 = vstv %s250
      %v253 = vsel %vm251, %v252, 0.0
      %254 = vst [vmem:[%s151] sm:$0x1] %v253
      %s255 = sadd.s32 %s23, %s24
      %p256 = scmp.lt.s32.totalorder %s255, 1
      %s257 = scalar_select %p256, %s255, 1
      %s258 = scalar_lea.vmem %s2, %s257
      // Predicated region
      $region25: #{patch_ce.1} parent=23 // pred_check
        %p259 = pneg %p79
      $region26: #{patch_ce.1} parent=23 // pred_check_branch
        %261 = sbr.rel (%p259) target = $region28
      $region27: #{patch_ce.1} parent=23 // pred_region
        %s262 = sadd.s32 %s23, %s24
      $region28: #{patch_ce.1} parent=23 // pred_fallthru
        _
    $region24: #{patch_ce.1} parent=5 // pred_fallthru
      _
    %p263 = scmp.le.s32.totalorder 2, %s14
    // Predicated region
    $region29: #{patch_ce.1} parent=5 // pred_check
      %p264 = pneg %p263
    $region30: #{patch_ce.1} parent=5 // pred_check_branch
      %266 = sbr.rel (%p264) target = $region32
    $region31: #{patch_ce.1} parent=5 // pred_region
      %s267 = ssub.s32 %s14, 2
      // Predicated region
      $region33: #{patch_ce.1} parent=31 // pred_check
        %p268 = pneg %p85
      $region34: #{patch_ce.1} parent=31 // pred_check_branch
        %270 = sbr.rel (%p268) target = $region36
      $region35: #{patch_ce.1} parent=31 // pred_region
        %s271 = sadd.s32 %s25, %s26
        %p272 = scmp.lt.s32.totalorder %s271, 1
        %s273 = scalar_select %p272, %s271, 1
        %s274 = scalar_lea.vmem %s2, %s273
      $region36: #{patch_ce.1} parent=31 // pred_fallthru
        _
    $region32: #{patch_ce.1} parent=5 // pred_fallthru
      _
  $region6: #{patch_ce.1} parent=0 // loop_footer
    %s18 = sadd.s32 1, %s14
  $region7: #{patch_ce.1} parent=0 // loop_footer_branch
    %13 = sbr.rel target = $region3
  $region8: #{patch_ce.1} parent=0 // loop_exit
    _

</llo_original>
